<compile_context>
chip_gen: v7x
topology: tpu7x:2x2x1
jax: 0.10.0
libtpu: 0.0.40
codegen_flags: <defaults>
</compile_context>

<pallas_src>
import functools
import math

import jax
import jax.numpy as jnp
from jax.experimental import pallas as pl
from jax.experimental.pallas import tpu as pltpu


def _round_up(a, b):
    return (a + b - 1) // b * b


def _arcface_partial_kernel(x_ref, w_ref, labels_ref, bias_ref,
                            m_ref, l_ref, t_ref, *, s, bt, ct, add_bias):
    """One (batch_tile, class_split, class_tile) grid step.

    Accumulates the online-logsumexp state of s*cosine plus the target-class
    cosine into the (bt, 1) output blocks (resident across the inner axis).
    """
    sp = pl.program_id(1)              # class split        (parallel)
    k = pl.program_id(2)               # class tile in split (reduction)
    nk = pl.num_programs(2)

    @pl.when(k == 0)
    def _():
        m_ref[...] = jnp.full_like(m_ref, -1e30)
        l_ref[...] = jnp.zeros_like(l_ref)
        t_ref[...] = jnp.zeros_like(t_ref)

    # (bt, ct) cosine tile on the MXU.  x / W are pre-normalized bf16; the
    # accumulation is f32.  W is already (D, C) so no transpose is needed.
    cosine = jnp.dot(x_ref[...], w_ref[...],
                     preferred_element_type=jnp.float32)

    logits = cosine * s
    if add_bias:                       # -1e30 on padded class columns
        logits = logits + bias_ref[...]

    # Target-class cosine: each row's label falls in exactly one class tile.
    cls = ((sp * nk + k) * ct
           + jax.lax.broadcasted_iota(jnp.int32, (bt, ct), 1))
    t_ref[...] += jnp.sum(jnp.where(cls == labels_ref[...], cosine, 0.0),
                          axis=1, keepdims=True)

    # Online logsumexp over s*cosine.
    m_old = m_ref[...]
    m_new = jnp.maximum(m_old, jnp.max(logits, axis=1, keepdims=True))
    l_ref[...] = (l_ref[...] * jnp.exp(m_old - m_new)
                  + jnp.sum(jnp.exp(logits - m_new), axis=1, keepdims=True))
    m_ref[...] = m_new


def prepare_arcface_weight(w, *, ct=2048, num_class_splits=1,
                           stream_dtype=jnp.bfloat16):
    """One-time weight preparation (hoist out of the training/eval step).

    Normalizes W rows in f32, casts to the MXU stream dtype, transposes to
    (D_pad, C_pad), and builds the padded-class logit bias.
    """
    C, D = w.shape
    eps = 1e-12
    w32 = w.astype(jnp.float32)
    inv = jax.lax.rsqrt(jnp.maximum(jnp.sum(w32 * w32, axis=1, keepdims=True),
                                    eps * eps))
    wn = w32 * inv

    ct = min(ct, _round_up(C, 128))
    C_pad = _round_up(C, ct * num_class_splits)
    D_pad = _round_up(D, 128)

    w_t = (jnp.zeros((D_pad, C_pad), stream_dtype)
           .at[:D, :C].set(wn.T.astype(stream_dtype)))
    bias = jnp.full((1, C_pad), -1e30, jnp.float32).at[:, :C].set(0.0)
    return {
        "w_t": w_t, "bias": bias, "ct": ct,
        "num_class_splits": num_class_splits,
        "n_classes": C, "in_features": D,
    }


def arcface_loss(x, labels, prepared, *, s=30.0, m=0.5, bt=256):
    """Mean ArcFace cross-entropy loss (matches ArcFaceLoss.forward)."""
    B, D = x.shape
    assert D == prepared["in_features"]
    w_t, bias = prepared["w_t"], prepared["bias"]
    ct = prepared["ct"]
    n_splits = prepared["num_class_splits"]
    C = prepared["n_classes"]
    D_pad, C_pad = w_t.shape
    nk = C_pad // (ct * n_splits)          # class tiles per split
    stream_dtype = w_t.dtype

    # Normalize x in f32 (F.normalize, eps=1e-12), then cast for the MXU.
    eps = 1e-12
    x32 = x.astype(jnp.float32)
    inv = jax.lax.rsqrt(jnp.maximum(jnp.sum(x32 * x32, axis=1, keepdims=True),
                                    eps * eps))
    xn = (x32 * inv).astype(stream_dtype)

    bt = min(bt, _round_up(B, 16))
    B_pad = _round_up(B, bt)
    x_p = jnp.zeros((B_pad, D_pad), stream_dtype).at[:B, :D].set(xn)
    lab_p = jnp.zeros((B_pad, 1), jnp.int32).at[:B, 0].set(
        labels.astype(jnp.int32))

    grid = (B_pad // bt, n_splits, nk)
    kernel = functools.partial(_arcface_partial_kernel, s=float(s), bt=bt,
                               ct=ct, add_bias=(C_pad != C))

    part_shape = jax.ShapeDtypeStruct((B_pad, n_splits), jnp.float32)
    part_spec = pl.BlockSpec((bt, 1), lambda i, sp, k: (i, sp))

    m_p, l_p, t_p = pl.pallas_call(
        kernel,
        out_shape=(part_shape, part_shape, part_shape),
        grid_spec=pltpu.PrefetchScalarGridSpec(
            num_scalar_prefetch=0,
            grid=grid,
            in_specs=[
                # x: fetched once per batch tile (index independent of sp, k).
                pl.BlockSpec((bt, D_pad), lambda i, sp, k: (i, 0)),
                # W: bf16 stream, one (D_pad, ct) tile per inner step.  If a
                # trace still shows exposed DMA, add pipeline_mode=pl.Buffered(3).
                pl.BlockSpec((D_pad, ct), lambda i, sp, k: (0, sp * nk + k)),
                pl.BlockSpec((bt, 1), lambda i, sp, k: (i, 0)),
                pl.BlockSpec((1, ct), lambda i, sp, k: (0, sp * nk + k)),
            ],
            out_specs=(part_spec, part_spec, part_spec),
        ),
        compiler_params=pltpu.CompilerParams(
            dimension_semantics=("parallel", "parallel", "arbitrary"),
            vmem_limit_bytes=32 * 1024 * 1024,   # safe on v7x (64 MiB part)
        ),
    )(x_p, w_t, lab_p, bias)

    # Merge per-split logsumexp partials and apply the ArcFace margin to the
    # single target logit per row (tiny O(B) work).
    m_tot = jnp.max(m_p, axis=1, keepdims=True)
    l_tot = jnp.sum(l_p * jnp.exp(m_p - m_tot), axis=1, keepdims=True)
    cos_t = jnp.sum(t_p, axis=1, keepdims=True)

    cos_m, sin_m = math.cos(m), math.sin(m)
    th, mm = math.cos(math.pi - m), math.sin(math.pi - m) * m
    sin_t = jnp.sqrt(jnp.clip(1.0 - cos_t * cos_t, 0.0, 1.0))
    phi_t = cos_t * cos_m - sin_t * sin_m
    phi_t = jnp.where(cos_t > th, phi_t, cos_t - mm)     # easy_margin=False

    # phi_t <= cos_t <= m_tot/s, so both exponents are <= 1.  Split the
    # correction to avoid catastrophic cancellation / log of a non-positive.
    l_others = jnp.maximum(l_tot - jnp.exp(s * cos_t - m_tot), 0.0)
    l_corr = l_others + jnp.exp(s * phi_t - m_tot)
    row_loss = (m_tot + jnp.log(l_corr)) - s * phi_t      # (B_pad, 1)
    return jnp.mean(row_loss[:B, 0])


# TODO(synk): ArcFaceLoss.get_logits (inference-only helper, s * cosine) is not
# implemented here; only the forward/loss path is.


def _reference_loss(x, w, labels, s=30.0, m=0.5):
    eps = 1e-12
    xn = x / jnp.maximum(jnp.linalg.norm(x, axis=1, keepdims=True), eps)
    wn = w / jnp.maximum(jnp.linalg.norm(w, axis=1, keepdims=True), eps)
    cosine = xn @ wn.T
    sine = jnp.sqrt(jnp.clip(1.0 - cosine ** 2, 0.0, 1.0))
    phi = cosine * math.cos(m) - sine * math.sin(m)
    phi = jnp.where(cosine > math.cos(math.pi - m), phi,
                    cosine - math.sin(math.pi - m) * m)
    one_hot = jax.nn.one_hot(labels, w.shape[0], dtype=jnp.float32)
    logits = (one_hot * phi + (1.0 - one_hot) * cosine) * s
    logz = jax.scipy.special.logsumexp(logits, axis=1)
    tgt = jnp.take_along_axis(logits, labels[:, None], axis=1)[:, 0]
    return jnp.mean(logz - tgt)


if __name__ == "__main__":
    # Config 1: canonical small shapes (B=8, in_features=32, out_features=16).
    B, D, C = 8, 32, 16
    kx, kw, kl = jax.random.split(jax.random.PRNGKey(0), 3)
    x = jax.random.normal(kx, (B, D), dtype=jnp.float32)
    bound = math.sqrt(6.0 / (D + C))                       # xavier_uniform_
    w = jax.random.uniform(kw, (C, D), minval=-bound, maxval=bound,
                           dtype=jnp.float32)
    labels = jax.random.randint(kl, (B,), 0, C, dtype=jnp.int32)

    prepared = prepare_arcface_weight(w)                   # one-time prep
    loss = arcface_loss(x, labels, prepared)
    jax.block_until_ready(loss)
    ref = _reference_loss(x, w, labels)
    # bf16 MXU stream -> ~1e-3 cosine precision; tolerance loosened accordingly.
    assert jnp.allclose(loss, ref, rtol=2e-2, atol=2e-2), (loss, ref)

    # Config 2: ragged class count, multiple batch/class tiles, and the
    # dual-TensorCore class-split path (num_class_splits=2).
    B2, D2, C2 = 24, 72, 300
    kx2, kw2, kl2 = jax.random.split(jax.random.PRNGKey(1), 3)
    x2 = jax.random.normal(kx2, (B2, D2), dtype=jnp.float32)
    bound2 = math.sqrt(6.0 / (D2 + C2))
    w2 = jax.random.uniform(kw2, (C2, D2), minval=-bound2, maxval=bound2,
                            dtype=jnp.float32)
    labels2 = jax.random.randint(kl2, (B2,), 0, C2, dtype=jnp.int32)

    prepared2 = prepare_arcface_weight(w2, ct=128, num_class_splits=2)
    loss2 = arcface_loss(x2, labels2, prepared2, bt=16)
    jax.block_until_ready(loss2)
    ref2 = _reference_loss(x2, w2, labels2)
    assert jnp.allclose(loss2, ref2, rtol=2e-2, atol=2e-2), (loss2, ref2)

    print("KERNEL_OK")
</pallas_src>

<mosaic_0001>
module attributes {stable_mosaic.version = 11 : i64} {
  func.func @_arcface_partial_kernel(%arg0: i32, %arg1: i32, %arg2: i32, %arg3: memref<16x128xbf16, #tpu.memory_space<vmem>>, %arg4: memref<128x128xbf16, #tpu.memory_space<vmem>>, %arg5: memref<16x1xi32, #tpu.memory_space<vmem>>, %arg6: memref<1x128xf32, #tpu.memory_space<vmem>>, %arg7: memref<16x1xf32, #tpu.memory_space<vmem>>, %arg8: memref<16x1xf32, #tpu.memory_space<vmem>>, %arg9: memref<16x1xf32, #tpu.memory_space<vmem>>) attributes {dimension_semantics = [#tpu.dimension_semantics<parallel>, #tpu.dimension_semantics<parallel>, #tpu.dimension_semantics<arbitrary>], iteration_bounds = array<i64: 1, 1, 1>, scalar_prefetch = 0 : i64, scratch_operands = 0 : i64, tpu.core_type = #tpu.core_type<tc>, window_params = [{transform_indices = @transform_0, window_bounds = array<i64: 16, 128>}, {transform_indices = @transform_1, window_bounds = array<i64: 128, 128>}, {transform_indices = @transform_2, window_bounds = array<i64: 16, 1>}, {transform_indices = @transform_3, window_bounds = array<i64: 1, 128>}, {transform_indices = @transform_4, window_bounds = array<i64: 16, 1>}, {transform_indices = @transform_5, window_bounds = array<i64: 16, 1>}, {transform_indices = @transform_6, window_bounds = array<i64: 16, 1>}]} {
    %c0_i32 = arith.constant 0 : i32
    %0 = arith.cmpi eq, %arg2, %c0_i32 : i32
    %1 = arith.extui %0 : i1 to i32
    %c0_i32_0 = arith.constant 0 : i32
    %2 = arith.cmpi ne, %1, %c0_i32_0 : i32
    scf.if %2 {
      %cst_25 = arith.constant -1.000000e+30 : f32
      %43 = vector.broadcast %cst_25 : f32 to vector<16x1xf32>
      %c0_26 = arith.constant 0 : index
      %c0_27 = arith.constant 0 : index
      %44 = vector.load %arg7[%c0_26, %c0_27] : memref<16x1xf32, #tpu.memory_space<vmem>>, vector<16x1xf32>
      tpu.vector_store %arg7[%c0_26, %c0_27], %43 {strides = array<i32>} : memref<16x1xf32, #tpu.memory_space<vmem>>, vector<16x1xf32>,
      %cst_28 = arith.constant 0.000000e+00 : f32
      %45 = vector.broadcast %cst_28 : f32 to vector<16x1xf32>
      %c0_29 = arith.constant 0 : index
      %c0_30 = arith.constant 0 : index
      %46 = vector.load %arg8[%c0_29, %c0_30] : memref<16x1xf32, #tpu.memory_space<vmem>>, vector<16x1xf32>
      tpu.vector_store %arg8[%c0_29, %c0_30], %45 {strides = array<i32>} : memref<16x1xf32, #tpu.memory_space<vmem>>, vector<16x1xf32>,
      %cst_31 = arith.constant 0.000000e+00 : f32
      %47 = vector.broadcast %cst_31 : f32 to vector<16x1xf32>
      %c0_32 = arith.constant 0 : index
      %c0_33 = arith.constant 0 : index
      %48 = vector.load %arg9[%c0_32, %c0_33] : memref<16x1xf32, #tpu.memory_space<vmem>>, vector<16x1xf32>
      tpu.vector_store %arg9[%c0_32, %c0_33], %47 {strides = array<i32>} : memref<16x1xf32, #tpu.memory_space<vmem>>, vector<16x1xf32>,
    } else {
    }
    %c0 = arith.constant 0 : index
    %c0_1 = arith.constant 0 : index
    %3 = vector.load %arg3[%c0, %c0_1] : memref<16x128xbf16, #tpu.memory_space<vmem>>, vector<16x128xbf16>
    %c0_2 = arith.constant 0 : index
    %c0_3 = arith.constant 0 : index
    %4 = vector.load %arg4[%c0_2, %c0_3] : memref<128x128xbf16, #tpu.memory_space<vmem>>, vector<128x128xbf16>
    %cst = arith.constant dense<0.000000e+00> : vector<16x128xf32>
    %5 = tpu.matmul %3, %4, %cst {dimension_numbers = #tpu.dot_dimension_numbers<[1], [0], [0], [1], [0, 0, 1, 1], [], []>} : vector<16x128xbf16>, vector<128x128xbf16>, vector<16x128xf32> -> vector<16x128xf32>
    %cst_4 = arith.constant 3.000000e+01 : f32
    %6 = vector.broadcast %cst_4 : f32 to vector<16x128xf32>
    %7 = arith.mulf %5, %6 : vector<16x128xf32>
    %c0_5 = arith.constant 0 : index
    %c0_6 = arith.constant 0 : index
    %8 = vector.load %arg6[%c0_5, %c0_6] : memref<1x128xf32, #tpu.memory_space<vmem>>, vector<1x128xf32>
    %9 = vector.broadcast %8 : vector<1x128xf32> to vector<16x128xf32>
    %10 = arith.addf %7, %9 : vector<16x128xf32>
    %c1_i32 = arith.constant 1 : i32
    %11 = arith.muli %arg1, %c1_i32 : i32
    %12 = arith.addi %11, %arg2 : i32
    %c128_i32 = arith.constant 128 : i32
    %13 = arith.muli %12, %c128_i32 : i32
    %14 = tpu.iota {dimensions = array<i32: 1>} : vector<16x128xi32>
    %15 = vector.broadcast %13 : i32 to vector<16x128xi32>
    %16 = arith.addi %15, %14 : vector<16x128xi32>
    %c0_7 = arith.constant 0 : index
    %c0_8 = arith.constant 0 : index
    %17 = vector.load %arg9[%c0_7, %c0_8] : memref<16x1xf32, #tpu.memory_space<vmem>>, vector<16x1xf32>
    %c0_9 = arith.constant 0 : index
    %c0_10 = arith.constant 0 : index
    %18 = vector.load %arg5[%c0_9, %c0_10] : memref<16x1xi32, #tpu.memory_space<vmem>>, vector<16x1xi32>
    %19 = vector.broadcast %18 : vector<16x1xi32> to vector<16x128xi32>
    %20 = arith.cmpi eq, %16, %19 : vector<16x128xi32>
    %cst_11 = arith.constant 0.000000e+00 : f32
    %21 = vector.broadcast %cst_11 : f32 to vector<16x128xf32>
    %22 = arith.select %20, %5, %21 : vector<16x128xi1>, vector<16x128xf32>
    %cst_12 = arith.constant dense<0.000000e+00> : vector<16xf32>
    %23 = vector.multi_reduction <add>, %22, %cst_12 [1] : vector<16x128xf32> to vector<16xf32>
    %24 = vector.shape_cast %23 : vector<16xf32> to vector<16x1xf32>
    %25 = arith.addf %17, %24 : vector<16x1xf32>
    %c0_13 = arith.constant 0 : index
    %c0_14 = arith.constant 0 : index
    %26 = vector.load %arg9[%c0_13, %c0_14] : memref<16x1xf32, #tpu.memory_space<vmem>>, vector<16x1xf32>
    tpu.vector_store %arg9[%c0_13, %c0_14], %25 {strides = array<i32>} : memref<16x1xf32, #tpu.memory_space<vmem>>, vector<16x1xf32>,
    %c0_15 = arith.constant 0 : index
    %c0_16 = arith.constant 0 : index
    %27 = vector.load %arg7[%c0_15, %c0_16] : memref<16x1xf32, #tpu.memory_space<vmem>>, vector<16x1xf32>
    %cst_17 = arith.constant dense<0xFF800000> : vector<16xf32>
    %28 = vector.multi_reduction <maximumf>, %10, %cst_17 [1] : vector<16x128xf32> to vector<16xf32>
    %29 = vector.shape_cast %28 : vector<16xf32> to vector<16x1xf32>
    %30 = arith.maximumf %27, %29 : vector<16x1xf32>
    %c0_18 = arith.constant 0 : index
    %c0_19 = arith.constant 0 : index
    %31 = vector.load %arg8[%c0_18, %c0_19] : memref<16x1xf32, #tpu.memory_space<vmem>>, vector<16x1xf32>
    %32 = arith.subf %27, %30 : vector<16x1xf32>
    %33 = math.exp %32 : vector<16x1xf32>
    %34 = arith.mulf %31, %33 : vector<16x1xf32>
    %35 = vector.broadcast %30 : vector<16x1xf32> to vector<16x128xf32>
    %36 = arith.subf %10, %35 : vector<16x128xf32>
    %37 = math.exp %36 : vector<16x128xf32>
    %cst_20 = arith.constant dense<0.000000e+00> : vector<16xf32>
    %38 = vector.multi_reduction <add>, %37, %cst_20 [1] : vector<16x128xf32> to vector<16xf32>
    %39 = vector.shape_cast %38 : vector<16xf32> to vector<16x1xf32>
    %40 = arith.addf %34, %39 : vector<16x1xf32>
    %c0_21 = arith.constant 0 : index
    %c0_22 = arith.constant 0 : index
    %41 = vector.load %arg8[%c0_21, %c0_22] : memref<16x1xf32, #tpu.memory_space<vmem>>, vector<16x1xf32>
    tpu.vector_store %arg8[%c0_21, %c0_22], %40 {strides = array<i32>} : memref<16x1xf32, #tpu.memory_space<vmem>>, vector<16x1xf32>,
    %c0_23 = arith.constant 0 : index
    %c0_24 = arith.constant 0 : index
    %42 = vector.load %arg7[%c0_23, %c0_24] : memref<16x1xf32, #tpu.memory_space<vmem>>, vector<16x1xf32>
    tpu.vector_store %arg7[%c0_23, %c0_24], %30 {strides = array<i32>} : memref<16x1xf32, #tpu.memory_space<vmem>>, vector<16x1xf32>,
    return
  }
  func.func @transform_0(%arg0: i32, %arg1: i32, %arg2: i32) -> (i32, i32) {
    %c0_i32 = arith.constant 0 : i32
    %c0_i32_0 = arith.constant 0 : i32
    return %arg0, %c0_i32 : i32, i32
  }
  func.func @transform_1(%arg0: i32, %arg1: i32, %arg2: i32) -> (i32, i32) {
    %c1_i32 = arith.constant 1 : i32
    %0 = arith.muli %arg1, %c1_i32 : i32
    %1 = arith.addi %0, %arg2 : i32
    %c0_i32 = arith.constant 0 : i32
    %c0_i32_0 = arith.constant 0 : i32
    return %c0_i32, %1 : i32, i32
  }
  func.func @transform_2(%arg0: i32, %arg1: i32, %arg2: i32) -> (i32, i32) {
    %c0_i32 = arith.constant 0 : i32
    %c0_i32_0 = arith.constant 0 : i32
    return %arg0, %c0_i32 : i32, i32
  }
  func.func @transform_3(%arg0: i32, %arg1: i32, %arg2: i32) -> (i32, i32) {
    %c1_i32 = arith.constant 1 : i32
    %0 = arith.muli %arg1, %c1_i32 : i32
    %1 = arith.addi %0, %arg2 : i32
    %c0_i32 = arith.constant 0 : i32
    %c0_i32_0 = arith.constant 0 : i32
    return %c0_i32, %1 : i32, i32
  }
  func.func @transform_4(%arg0: i32, %arg1: i32, %arg2: i32) -> (i32, i32) {
    %c0_i32 = arith.constant 0 : i32
    return %arg0, %arg1 : i32, i32
  }
  func.func @transform_5(%arg0: i32, %arg1: i32, %arg2: i32) -> (i32, i32) {
    %c0_i32 = arith.constant 0 : i32
    return %arg0, %arg1 : i32, i32
  }
  func.func @transform_6(%arg0: i32, %arg1: i32, %arg2: i32) -> (i32, i32) {
    %c0_i32 = arith.constant 0 : i32
    return %arg0, %arg1 : i32, i32
  }
}

</mosaic_0001>

<llo_original>
// kernel: tpu_custom_call.1
$region0: #{tpu_custom_call.1}
  #allocation0 [shape = 'u32[]', space=smem, size = 0x4, offset = 0x4, fixed_abs, tag = 'smem constant byte address 0x4 - core index']
  #allocation1 [shape = 'u32[144,128]{1,0:T(1,128)}', space=vmem, size = 0x12000, scoped, tag = 'internal scratch']
  %s0 = inlined_call_operand.vmem [shape: bf16[16,128], index: 0, kind: input, shape index: {}]
  %s1 = inlined_call_operand.hbm [shape: bf16[128,128], index: 1, kind: input, shape index: {}]
  %s2 = inlined_call_operand.vmem [shape: s32[16,1], index: 2, kind: input, shape index: {}]
  %s3 = inlined_call_operand.vmem [shape: f32[1,128], index: 3, kind: input, shape index: {}]
  %s4 = inlined_call_operand.vmem [shape: f32[16,1], index: 4, kind: output, shape index: {0}]
  %s5 = inlined_call_operand.vmem [shape: f32[16,1], index: 5, kind: output, shape index: {1}]
  %s6 = inlined_call_operand.vmem [shape: f32[16,1], index: 6, kind: output, shape index: {2}]
  %7 = xla_tuple %s4, %s5, %s6
  %s8 = sld [smem:[#allocation0]]
  $region50: #{tpu_custom_call.1} parent=0
    _
  %s10 = ssub.s32 1, %s8
  %s11 = scalar_select 0, %s10, %s8
  $region1: #{tpu_custom_call.1} parent=0
    #allocation2 [shape = 'u8[32768]{0}', space=vmem, size = 0x8000, scoped, tag = 'input window, operand 1, single buffered']
    #allocation3 [shape = 's32[1]{0}', space=sflag, size = 0x4, scoped, tag = 'scoped memory for tpu_custom_call.1']
    %12 = vsyncpa [#allocation3], 0
    // Predicated region
    $region2: #{tpu_custom_call.1} parent=1 // pred_check
      _
    $region3: #{tpu_custom_call.1} parent=1 // pred_check_branch
      %14 = sbr.rel (0) target = $region5
    $region4: #{tpu_custom_call.1} parent=1 // pred_region
      _
    $region5: #{tpu_custom_call.1} parent=1 // pred_fallthru
      _
    // Predicated region
    $region6: #{tpu_custom_call.1} parent=1 // pred_check
      _
    $region7: #{tpu_custom_call.1} parent=1 // pred_check_branch
      %16 = sbr.rel (0) target = $region9
    $region8: #{tpu_custom_call.1} parent=1 // pred_region
      %s17 = sadd.s32 0, 0
      %s19 = ssub.s32 1024, 1024
      %20 = vsyncadd [#allocation3], %s19
      %s21 = smul.addr %s17, 64
      %s22 = scalar_lea.hbm %s1, %s21
      %s23 = sshll.u32 [#allocation2], 4
      %s24 = int_to_ptr.vmem [resolvable:$true] %s23
      %29 = dma.hbm_to_vmem [thread:$0]  %s22, 1024, %s24, [#allocation3], 64, 64, 4
    $region9: #{tpu_custom_call.1} parent=1 // pred_fallthru
      _
    // Predicated region
    $region10: #{tpu_custom_call.1} parent=1 // pred_check
      _
    $region11: #{tpu_custom_call.1} parent=1 // pred_check_branch
      %31 = sbr.rel (0) target = $region13
    $region12: #{tpu_custom_call.1} parent=1 // pred_region
      _
    $region13: #{tpu_custom_call.1} parent=1 // pred_fallthru
      _
    // Predicated region
    $region14: #{tpu_custom_call.1} parent=1 // pred_check
      _
    $region15: #{tpu_custom_call.1} parent=1 // pred_check_branch
      %33 = sbr.rel (0) target = $region17
    $region16: #{tpu_custom_call.1} parent=1 // pred_region
      %s34 = sadd.s32 0, 0
      %p35 = scmp.lt.s32.totalorder %s34, 0
      %s36 = scalar_select %p35, %s34, 0
      %s37 = scalar_lea.vmem %s3, %s36
      %s38 = sadd.s32 0, 0
    $region17: #{tpu_custom_call.1} parent=1 // pred_fallthru
      _
    // Predicated region
    $region18: #{tpu_custom_call.1} parent=1 // pred_check
      _
    $region19: #{tpu_custom_call.1} parent=1 // pred_check_branch
      %40 = sbr.rel (0) target = $region21
    $region20: #{tpu_custom_call.1} parent=1 // pred_region
      %41 = dma.done [#allocation3], 1024
    $region21: #{tpu_custom_call.1} parent=1 // pred_fallthru
      _
    %s42 = sadd.s32 0, 0
    %p43 = scmp.lt.s32.totalorder %s42, 0
    %s44 = scalar_select %p43, %s42, 0
    %s45 = scalar_lea.vmem %s3, %s44
    %s46 = sadd.s32 0, 0
    %s47 = sadd.s32 0, 0
    %p48 = scmp.lt.s32.totalorder %s47, 0
    %s49 = scalar_select %p48, %s47, 0
    %s50 = scalar_lea.vmem %s3, %s49
    %s51 = sadd.s32 0, 0
    %p53 = scmp.eq.s32.totalorder 0, 0
    // Predicated region
    $region22: #{tpu_custom_call.1} parent=1 // pred_check
      %p54 = pneg %p53
    $region23: #{tpu_custom_call.1} parent=1 // pred_check_branch
      %56 = sbr.rel (%p54) target = $region25
    $region24: #{tpu_custom_call.1} parent=1 // pred_region
      %vm57 = vcmask 7168
      %58 = vst.msk [vmem:[%s4] sm:$0xff] %vm57, -1e+30
      %59 = vst.msk [vmem:[%s4 + $0x8] sm:$0xff] %vm57, -1e+30
      %60 = vst.msk [vmem:[%s5] sm:$0xff] %vm57, 0.0
      %61 = vst.msk [vmem:[%s5 + $0x8] sm:$0xff] %vm57, 0.0
      %62 = vst.msk [vmem:[%s6] sm:$0xff] %vm57, 0.0
      %63 = vst.msk [vmem:[%s6 + $0x8] sm:$0xff] %vm57, 0.0
    $region25: #{tpu_custom_call.1} parent=1 // pred_fallthru
      _
    %v64 = vld [vmem:[%s0] sm:$0xf]
    %v65 = vld [vmem:[%s0 + $0x4] sm:$0xf]
    %v66 = vld [vmem:[#allocation2] sm:$0xf]
    %v67 = vld [vmem:[#allocation2 + $0x4] sm:$0xf]
    %v68 = vld [vmem:[#allocation2 + $0x8] sm:$0xf]
    %v69 = vld [vmem:[#allocation2 + $0xc] sm:$0xf]
    %v70 = vld [vmem:[#allocation2 + $0x10] sm:$0xf]
    %v71 = vld [vmem:[#allocation2 + $0x14] sm:$0xf]
    %v72 = vld [vmem:[#allocation2 + $0x18] sm:$0xf]
    %v73 = vld [vmem:[#allocation2 + $0x1c] sm:$0xf]
    %v74 = vld [vmem:[#allocation2 + $0x20] sm:$0xf]
    %v75 = vld [vmem:[#allocation2 + $0x24] sm:$0xf]
    %v76 = vld [vmem:[#allocation2 + $0x28] sm:$0xf]
    %v77 = vld [vmem:[#allocation2 + $0x2c] sm:$0xf]
    %v78 = vld [vmem:[#allocation2 + $0x30] sm:$0xf]
    %v79 = vld [vmem:[#allocation2 + $0x34] sm:$0xf]
    %v80 = vld [vmem:[#allocation2 + $0x38] sm:$0xf]
    %v81 = vld [vmem:[#allocation2 + $0x3c] sm:$0xf]
    %v84 = vunpack.c.l.b16 %v64
    %v85 = vunpack.c.l.b16 %v65
    %v86 = vpack.c.b16 %v85, %v84
    %v104 = vunpack.c.l.b16 %v66
    %v105 = vunpack.c.l.b16 %v67
    %v106 = vunpack.c.l.b16 %v68
    %v107 = vunpack.c.l.b16 %v69
    %v108 = vunpack.c.l.b16 %v70
    %v109 = vunpack.c.l.b16 %v71
    %v110 = vunpack.c.l.b16 %v72
    %v111 = vunpack.c.l.b16 %v73
    %v112 = vunpack.c.l.b16 %v74
    %v113 = vunpack.c.l.b16 %v75
    %v114 = vunpack.c.l.b16 %v76
    %v115 = vunpack.c.l.b16 %v77
    %v116 = vunpack.c.l.b16 %v78
    %v117 = vunpack.c.l.b16 %v79
    %v118 = vunpack.c.l.b16 %v80
    %v119 = vunpack.c.l.b16 %v81
    %v120 = vpack.c.b16 %v105, %v104
    %v121 = vpack.c.b16 %v107, %v106
    %v122 = vpack.c.b16 %v109, %v108
    %v123 = vpack.c.b16 %v111, %v110
    %v124 = vpack.c.b16 %v113, %v112
    %v125 = vpack.c.b16 %v115, %v114
    %v126 = vpack.c.b16 %v117, %v116
    %v127 = vpack.c.b16 %v119, %v118
    %136 = vmatprep.subr.bf16.mxu0 0
    %137 = vmatpush1.bf16.msra.mxu0 %v120
    %138 = vmatprep.subr.bf16.mxu0 0
    %139 = vmatpush1.bf16.msra.mxu0 %v121
    %140 = vmatprep.subr.bf16.mxu0 0
    %141 = vmatpush1.bf16.msra.mxu0 %v122
    %142 = vmatprep.subr.bf16.mxu0 0
    %143 = vmatpush1.bf16.msra.mxu0 %v123
    %144 = vmatprep.subr.bf16.mxu0 0
    %145 = vmatpush1.bf16.msra.mxu0 %v124
    %146 = vmatprep.subr.bf16.mxu0 0
    %147 = vmatpush1.bf16.msra.mxu0 %v125
    %148 = vmatprep.subr.bf16.mxu0 0
    %149 = vmatpush1.bf16.msra.mxu0 %v126
    %150 = vmatprep.subr.bf16.mxu0 0
    %151 = vmatpush1.bf16.msra.mxu0 %v127
    %152 = vmatprep.subr.bf16.mxu0 0
    %153 = vmatpush1.bf16.msra.mxu0 0
    %154 = vmatprep.subr.bf16.mxu0 0
    %155 = vmatpush1.bf16.msra.mxu0 0
    %156 = vmatprep.subr.bf16.mxu0 0
    %157 = vmatpush1.bf16.msra.mxu0 0
    %158 = vmatprep.subr.bf16.mxu0 0
    %159 = vmatpush1.bf16.msra.mxu0 0
    %160 = vmatprep.subr.bf16.mxu0 0
    %161 = vmatpush1.bf16.msra.mxu0 0
    %162 = vmatprep.subr.bf16.mxu0 0
    %163 = vmatpush1.bf16.msra.mxu0 0
    %164 = vmatprep.subr.bf16.mxu0 0
    %165 = vmatpush1.bf16.msra.mxu0 0
    %166 = vmatprep.subr.bf16.mxu0 0
    %167 = vmatpush1.bf16.msra.mxu0 0
    %168 = vmatprep.mubr.bf16.mxu0 0
    %169 = vmatmul.mubr.bf16.gmra.mrb[0].mxu0 %v86
    %v170 = vpop.f32.mrb[0].mxu0
    %v171 = vadd.f32 0.0, %v170
    %v172 = vpop.f32.mrb[0].mxu0
    %v173 = vpop.f32.mrb[0].mxu0
    %v174 = vadd.f32 0.0, %v173
    %v175 = vpop.f32.mrb[0].mxu0
    %176 = vdwg.mxu0
    %v177 = vmul.f32 %v171, 30.0
    %v178 = vmul.f32 %v174, 30.0
    %v179 = vld [vmem:[%s50] sm:$0x1]
    %v181 = vlaneseq
    %v182 = vshrl.u32 %v181, 7
    %v183 = vsub.s32 0, %v182
    %v184 = vrot.slane %v179, %v183
    %v186 = vadd.f32 %v177, %v184
    %v187 = vadd.f32 %v178, %v184
    %s188 = sadd.s32 0, 0
    %s189 = smul.u32 %s188, 128
    %v190 = vlaneseq
    %v191 = vand.u32 %v190, 127
    %v192 = vstv %s189
    %v193 = vadd.s32 %v192, %v191
    %v194 = vld [vmem:[%s6] sm:$0xff]
    %v195 = vld [vmem:[%s6 + $0x8] sm:$0xff]
    %v196 = vld [vmem:[%s2] sm:$0xff]
    %v197 = vld [vmem:[%s2 + $0x8] sm:$0xff]
    %198 = vset.pattern.permute.xlu0 0
    %199 = vperm.xlu0 %198, %v196
    %v200 = vpop.permute.xlu0 %199
    %201 = vset.pattern.permute.xlu0 0
    %202 = vperm.xlu0 %201, %v197
    %v203 = vpop.permute.xlu0 %202
    %vm204 = vcmp.eq.s32.totalorder %v193, %v200
    %vm205 = vcmp.eq.s32.totalorder %v193, %v203
    %v206 = vsel %vm204, %v171, 0.0
    %v207 = vsel %vm205, %v174, 0.0
    %208 = vadd.xlane.f32.xlu0 %v206
    %v209 = vpop.xlane.xlu0 %208
    %210 = vadd.xlane.f32.xlu0 %v207
    %v211 = vpop.xlane.xlu0 %210
    %v212 = vadd.f32 %v194, %v209
    %v213 = vadd.f32 %v195, %v211
    %vm214 = vcmask 7168
    %215 = vst.msk [vmem:[%s6] sm:$0xff] %vm214, %v212
    %216 = vst.msk [vmem:[%s6 + $0x8] sm:$0xff] %vm214, %v213
    %v217 = vld [vmem:[%s4] sm:$0xff]
    %v218 = vld [vmem:[%s4 + $0x8] sm:$0xff]
    %219 = vmax.xlane.f32.xlu0 %v186
    %v220 = vpop.xlane.xlu0 %219
    %221 = vmax.xlane.f32.xlu0 %v187
    %v222 = vpop.xlane.xlu0 %221
    %v223 = vmax.f32 %v217, %v220
    %v224 = vmax.f32 %v218, %v222
    %v225 = vld [vmem:[%s5] sm:$0xff]
    %v226 = vld [vmem:[%s5 + $0x8] sm:$0xff]
    %v227 = vsub.f32 %v217, %v223
    %v228 = vsub.f32 %v218, %v224
    %v229 = vmul.f32 %v227, 1.442695
    %v230 = vpow.pop %v229
    %v231 = vmul.f32 %v228, 1.442695
    %v232 = vpow.pop %v231
    %v233 = vmul.f32 %v225, %v230
    %v234 = vmul.f32 %v226, %v232
    %236 = vset.pattern.permute.xlu0 0
    %237 = vperm.xlu0 %236, %v223
    %v238 = vpop.permute.xlu0 %237
    %241 = vset.pattern.permute.xlu0 0
    %242 = vperm.xlu0 %241, %v224
    %v243 = vpop.permute.xlu0 %242
    %v245 = vsub.f32 %v186, %v238
    %v246 = vsub.f32 %v187, %v243
    %v247 = vmul.f32 %v245, 1.442695
    %v248 = vpow.pop %v247
    %v249 = vmul.f32 %v246, 1.442695
    %v250 = vpow.pop %v249
    %251 = vadd.xlane.f32.xlu0 %v248
    %v252 = vpop.xlane.xlu0 %251
    %253 = vadd.xlane.f32.xlu0 %v250
    %v254 = vpop.xlane.xlu0 %253
    %v255 = vadd.f32 %v233, %v252
    %v256 = vadd.f32 %v234, %v254
    %257 = vst.msk [vmem:[%s5] sm:$0xff] %vm214, %v255
    %258 = vst.msk [vmem:[%s5 + $0x8] sm:$0xff] %vm214, %v256
    %259 = vst.msk [vmem:[%s4] sm:$0xff] %vm214, %v223
    %260 = vst.msk [vmem:[%s4 + $0x8] sm:$0xff] %vm214, %v224
    // Predicated region
    $region26: #{tpu_custom_call.1} parent=1 // pred_check
      _
    $region27: #{tpu_custom_call.1} parent=1 // pred_check_branch
      %262 = sbr.rel (0) target = $region29
    $region28: #{tpu_custom_call.1} parent=1 // pred_region
      _
    $region29: #{tpu_custom_call.1} parent=1 // pred_fallthru
      _
    // Predicated region
    $region30: #{tpu_custom_call.1} parent=1 // pred_check
      _
    $region31: #{tpu_custom_call.1} parent=1 // pred_check_branch
      %264 = sbr.rel (0) target = $region33
    $region32: #{tpu_custom_call.1} parent=1 // pred_region
      _
    $region33: #{tpu_custom_call.1} parent=1 // pred_fallthru
      _
    // Predicated region
    $region34: #{tpu_custom_call.1} parent=1 // pred_check
      _
    $region35: #{tpu_custom_call.1} parent=1 // pred_check_branch
      %266 = sbr.rel (0) target = $region37
    $region36: #{tpu_custom_call.1} parent=1 // pred_region
      _
    $region37: #{tpu_custom_call.1} parent=1 // pred_fallthru
      _
    // Predicated region
    $region38: #{tpu_custom_call.1} parent=1 // pred_check
      _
    $region39: #{tpu_custom_call.1} parent=1 // pred_check_branch
      %268 = sbr.rel (0) target = $region41
    $region40: #{tpu_custom_call.1} parent=1 // pred_region
      _
    $region41: #{tpu_custom_call.1} parent=1 // pred_fallthru
      _
    // Predicated region
    $region42: #{tpu_custom_call.1} parent=1 // pred_check
      _
    $region43: #{tpu_custom_call.1} parent=1 // pred_check_branch
      %270 = sbr.rel (0) target = $region45
    $region44: #{tpu_custom_call.1} parent=1 // pred_region
      _
    $region45: #{tpu_custom_call.1} parent=1 // pred_fallthru
      _
    // Predicated region
    $region46: #{tpu_custom_call.1} parent=1 // pred_check
      _
    $region47: #{tpu_custom_call.1} parent=1 // pred_check_branch
      %272 = sbr.rel (0) target = $region49
    $region48: #{tpu_custom_call.1} parent=1 // pred_region
      _
    $region49: #{tpu_custom_call.1} parent=1 // pred_fallthru
      _
    %273 = vsyncpa [#allocation3], 1

</llo_original>
